<compile_context>
chip_gen: v6e
topology: v6e:2x2x1
jax: 0.10.0
libtpu: 0.0.40
codegen_flags: <defaults>
</compile_context>

<pallas_src>
import functools
import math

import jax
import jax.numpy as jnp
from jax import lax
from jax.experimental import pallas as pl
from jax.experimental.pallas import tpu as pltpu


def _focal_loss_kernel(*refs, gamma, hw, tile_hw, has_alpha, needs_mask):
    if has_alpha:
        logits_ref, tgt_ref, alpha_ref, out_ref = refs
    else:
        logits_ref, tgt_ref, out_ref = refs
        alpha_ref = None

    x = logits_ref[0].astype(jnp.float32)                  # (C, T)
    t = tgt_ref[0]                                         # (1, T) int32

    # Numerically stable log-softmax over the class (sublane) axis.
    m = jnp.max(x, axis=0, keepdims=True)                  # (1, T)
    z = x - m
    lse = jnp.log(jnp.sum(jnp.exp(z), axis=0, keepdims=True))
    logp = z - lse                                         # (C, T)

    # Gather log p_t (and alpha_t * log p_t) at the target class.  One shared
    # one-hot select feeds both reductions (cheap sublane reduces over C).
    # TODO(synk): out-of-range / ignore-index targets contribute zero loss
    # instead of raising like torch.gather would.
    row = lax.broadcasted_iota(jnp.int32, x.shape, 0)      # class id per sublane
    sel = jnp.where(row == t, logp, 0.0)                   # (C, T)
    logpt = jnp.sum(sel, axis=0, keepdims=True)            # (1, T) = log p_t
    if has_alpha:
        a = alpha_ref[...]                                 # (C, 1)
        wlogpt = jnp.sum(sel * a, axis=0, keepdims=True)   # alpha_t * log p_t
    else:
        wlogpt = logpt
    pt = jnp.exp(logpt)                                    # (1, T)

    # (1 - pt) ** gamma, specialised at trace time.
    if gamma == 0.0:
        loss = -wlogpt
    else:
        one_m_pt = 1.0 - pt
        if float(gamma).is_integer() and 0.0 < gamma <= 8.0:
            mod = one_m_pt
            for _ in range(int(gamma) - 1):
                mod = mod * one_m_pt
        else:
            mod = one_m_pt ** gamma
        loss = -mod * wlogpt                               # (1, T)

    if needs_mask:
        col = lax.broadcasted_iota(jnp.int32, loss.shape, 1)
        valid = (pl.program_id(1) * tile_hw + col) < hw
        loss = jnp.where(valid, loss, 0.0)

    # Per-tile partial sum (final sum / mean happens outside the kernel so the
    # whole grid stays parallel).
    out_ref[...] = jnp.full((1, 1, 1, 1), jnp.sum(loss), jnp.float32)


def focal_loss(logits, target, *, gamma=0.0, alpha=None, size_average=True,
               tile_hw=None):
    """Forward pass of FocalLoss.

    logits: (N, C, *spatial) or (N, C), float32 or bfloat16.
    target: (N, *spatial) or (N,), integer class ids in [0, C).
    """
    if logits.ndim > 2:
        n, c = int(logits.shape[0]), int(logits.shape[1])
        hw = int(math.prod(logits.shape[2:]))
        x = logits.reshape(n, c, hw)                       # contiguous view
        tgt = target.reshape(n, 1, hw).astype(jnp.int32)
    else:
        m, c = int(logits.shape[0]), int(logits.shape[1])
        n, hw = 1, m
        x = jnp.transpose(logits, (1, 0)).reshape(1, c, hw)
        tgt = target.reshape(1, 1, hw).astype(jnp.int32)

    # Alpha handling mirrors FocalLoss.__init__.
    has_alpha = alpha is not None
    if has_alpha:
        if isinstance(alpha, (float, int)):
            a = jnp.array([float(alpha), 1.0 - float(alpha)], jnp.float32)
        else:
            a = jnp.asarray(alpha, jnp.float32).reshape(-1)
        if a.shape[0] < c:
            # torch would error on gather for targets >= len(alpha); pad with 0.
            a = jnp.pad(a, (0, c - a.shape[0]))
        alpha_vec = a[:c].reshape(c, 1)

    # Tile selection: big lane-dense blocks (~2 MiB of logits) to amortize the
    # per-grid-step overhead; a whole-HW tile if it already fits the budget.
    itemsize = jnp.dtype(x.dtype).itemsize
    if tile_hw is None:
        target_bytes = 2 << 20
        if c * hw * itemsize <= target_bytes:
            tile_hw = hw
        else:
            tile_hw = int(max(128, min(16384,
                              (target_bytes // (c * itemsize)) // 128 * 128)))
            # TODO(synk): very large C (> ~4096) would also need tiling over
            # classes (two-pass softmax); not handled here.
    tile_hw = int(tile_hw)
    grid_hw = pl.cdiv(hw, tile_hw)
    needs_mask = (hw % tile_hw) != 0

    kernel = functools.partial(
        _focal_loss_kernel, gamma=float(gamma), hw=hw, tile_hw=tile_hw,
        has_alpha=has_alpha, needs_mask=needs_mask)

    in_specs = [
        pl.BlockSpec((1, c, tile_hw), lambda i, j: (i, 0, j)),   # logits
        pl.BlockSpec((1, 1, tile_hw), lambda i, j: (i, 0, j)),   # targets
    ]
    args = [x, tgt]
    if has_alpha:
        in_specs.append(pl.BlockSpec((c, 1), lambda i, j: (0, 0)))  # alpha
        args.append(alpha_vec)

    partials = pl.pallas_call(
        kernel,
        out_shape=jax.ShapeDtypeStruct((n, grid_hw, 1, 1), jnp.float32),
        grid_spec=pltpu.PrefetchScalarGridSpec(
            num_scalar_prefetch=0,
            grid=(n, grid_hw),
            in_specs=in_specs,
            out_specs=pl.BlockSpec((1, 1, 1, 1), lambda i, j: (i, j, 0, 0)),
        ),
        compiler_params=pltpu.CompilerParams(
            dimension_semantics=("parallel", "parallel"),
        ),
    )(*args)

    total = jnp.sum(partials)
    if size_average:
        total = total / float(n * hw)
    return total


def _focal_loss_ref(logits, target, gamma, alpha, size_average):
    if logits.ndim > 2:
        n, c = logits.shape[0], logits.shape[1]
        x = jnp.transpose(logits.reshape(n, c, -1), (0, 2, 1)).reshape(-1, c)
    else:
        x = logits
    t = target.reshape(-1)
    logp = jax.nn.log_softmax(x, axis=1)
    logpt = jnp.take_along_axis(logp, t[:, None], axis=1)[:, 0]
    pt = jnp.exp(logpt)
    if alpha is not None:
        if isinstance(alpha, (float, int)):
            avec = jnp.array([alpha, 1.0 - alpha], jnp.float32)
        else:
            avec = jnp.asarray(alpha, jnp.float32)
        logpt = logpt * avec[t]
    loss = -1.0 * (1.0 - pt) ** gamma * logpt
    return loss.mean() if size_average else loss.sum()


if __name__ == "__main__":
    key = jax.random.PRNGKey(0)
    k1, k2, k3, k4, k5, k6 = jax.random.split(key, 6)

    # Config 1: 4-D input, list alpha, gamma=2, mean reduction.
    N, C, H, W = 2, 4, 16, 16
    logits = jax.random.normal(k1, (N, C, H, W), dtype=jnp.float32)
    target = jax.random.randint(k2, (N, H, W), 0, C, dtype=jnp.int32)
    alpha = [0.1, 0.2, 0.3, 0.4]
    out = focal_loss(logits, target, gamma=2.0, alpha=alpha, size_average=True)
    out = jax.block_until_ready(out)
    ref = _focal_loss_ref(logits, target, 2.0, alpha, True)
    assert jnp.allclose(out, ref, rtol=1e-5, atol=1e-5), (out, ref)

    # Config 2: module defaults (gamma=0, alpha=None), sum reduction, spatial
    # size not a multiple of the tile (exercises the in-kernel validity mask).
    H2, W2 = 12, 12
    logits2 = jax.random.normal(k3, (N, C, H2, W2), dtype=jnp.float32)
    target2 = jax.random.randint(k4, (N, H2, W2), 0, C, dtype=jnp.int32)
    out2 = focal_loss(logits2, target2, gamma=0.0, alpha=None,
                      size_average=False, tile_hw=128)
    out2 = jax.block_until_ready(out2)
    ref2 = _focal_loss_ref(logits2, target2, 0.0, None, False)
    assert jnp.allclose(out2, ref2, rtol=1e-5, atol=1e-4), (out2, ref2)

    # Config 3: 2-D input, scalar alpha (torch's [alpha, 1-alpha] path).
    M3, C3 = 64, 2
    logits3 = jax.random.normal(k5, (M3, C3), dtype=jnp.float32)
    target3 = jax.random.randint(k6, (M3,), 0, C3, dtype=jnp.int32)
    out3 = focal_loss(logits3, target3, gamma=1.0, alpha=0.25,
                      size_average=True)
    out3 = jax.block_until_ready(out3)
    ref3 = _focal_loss_ref(logits3, target3, 1.0, 0.25, True)
    assert jnp.allclose(out3, ref3, rtol=1e-5, atol=1e-5), (out3, ref3)

    print("KERNEL_OK")
</pallas_src>

<mosaic_0001>
module attributes {stable_mosaic.version = 11 : i64} {
  func.func @_focal_loss_kernel(%arg0: i32, %arg1: i32, %arg2: memref<1x4x256xf32, #tpu.memory_space<vmem>>, %arg3: memref<1x1x256xi32, #tpu.memory_space<vmem>>, %arg4: memref<4x1xf32, #tpu.memory_space<vmem>>, %arg5: memref<1x1x1x1xf32, #tpu.memory_space<vmem>>) attributes {dimension_semantics = [#tpu.dimension_semantics<parallel>, #tpu.dimension_semantics<parallel>], iteration_bounds = array<i64: 2, 1>, scalar_prefetch = 0 : i64, scratch_operands = 0 : i64, tpu.core_type = #tpu.core_type<tc>, window_params = [{transform_indices = @transform_0, window_bounds = array<i64: 1, 4, 256>}, {transform_indices = @transform_1, window_bounds = array<i64: 1, 1, 256>}, {pipeline_mode = #tpu.pipeline_mode<synchronous>, transform_indices = @transform_2, window_bounds = array<i64: 4, 1>}, {transform_indices = @transform_3, window_bounds = array<i64: 1, 1, 1, 1>}]} {
    %c0 = arith.constant 0 : index
    %c0_0 = arith.constant 0 : index
    %c0_1 = arith.constant 0 : index
    %0 = vector.load %arg2[%c0, %c0_0, %c0_1] : memref<1x4x256xf32, #tpu.memory_space<vmem>>, vector<1x4x256xf32>
    %1 = vector.shape_cast %0 : vector<1x4x256xf32> to vector<4x256xf32>
    %c0_2 = arith.constant 0 : index
    %c0_3 = arith.constant 0 : index
    %c0_4 = arith.constant 0 : index
    %2 = vector.load %arg3[%c0_2, %c0_3, %c0_4] : memref<1x1x256xi32, #tpu.memory_space<vmem>>, vector<1x1x256xi32>
    %3 = vector.shape_cast %2 : vector<1x1x256xi32> to vector<1x256xi32>
    %cst = arith.constant dense<0xFF800000> : vector<256xf32>
    %4 = vector.multi_reduction <maximumf>, %1, %cst [0] : vector<4x256xf32> to vector<256xf32>
    %5 = vector.shape_cast %4 : vector<256xf32> to vector<1x256xf32>
    %6 = vector.broadcast %5 : vector<1x256xf32> to vector<4x256xf32>
    %7 = arith.subf %1, %6 : vector<4x256xf32>
    %8 = math.exp %7 : vector<4x256xf32>
    %cst_5 = arith.constant dense<0.000000e+00> : vector<256xf32>
    %9 = vector.multi_reduction <add>, %8, %cst_5 [0] : vector<4x256xf32> to vector<256xf32>
    %10 = vector.shape_cast %9 : vector<256xf32> to vector<1x256xf32>
    %11 = math.log %10 : vector<1x256xf32>
    %12 = vector.broadcast %11 : vector<1x256xf32> to vector<4x256xf32>
    %13 = arith.subf %7, %12 : vector<4x256xf32>
    %14 = tpu.iota {dimensions = array<i32: 0>} : vector<4x256xi32>
    %15 = vector.broadcast %3 : vector<1x256xi32> to vector<4x256xi32>
    %16 = arith.cmpi eq, %14, %15 : vector<4x256xi32>
    %cst_6 = arith.constant 0.000000e+00 : f32
    %17 = vector.broadcast %cst_6 : f32 to vector<4x256xf32>
    %18 = arith.select %16, %13, %17 : vector<4x256xi1>, vector<4x256xf32>
    %cst_7 = arith.constant dense<0.000000e+00> : vector<256xf32>
    %19 = vector.multi_reduction <add>, %18, %cst_7 [0] : vector<4x256xf32> to vector<256xf32>
    %20 = vector.shape_cast %19 : vector<256xf32> to vector<1x256xf32>
    %c0_8 = arith.constant 0 : index
    %c0_9 = arith.constant 0 : index
    %21 = vector.load %arg4[%c0_8, %c0_9] : memref<4x1xf32, #tpu.memory_space<vmem>>, vector<4x1xf32>
    %22 = vector.broadcast %21 : vector<4x1xf32> to vector<4x256xf32>
    %23 = arith.mulf %18, %22 : vector<4x256xf32>
    %cst_10 = arith.constant dense<0.000000e+00> : vector<256xf32>
    %24 = vector.multi_reduction <add>, %23, %cst_10 [0] : vector<4x256xf32> to vector<256xf32>
    %25 = vector.shape_cast %24 : vector<256xf32> to vector<1x256xf32>
    %26 = math.exp %20 : vector<1x256xf32>
    %cst_11 = arith.constant 1.000000e+00 : f32
    %27 = vector.broadcast %cst_11 : f32 to vector<1x256xf32>
    %28 = arith.subf %27, %26 : vector<1x256xf32>
    %29 = arith.mulf %28, %28 : vector<1x256xf32>
    %cst_12 = arith.constant 0.000000e+00 : f32
    %30 = vector.broadcast %cst_12 : f32 to vector<1x256xf32>
    %31 = arith.subf %30, %29 : vector<1x256xf32>
    %32 = arith.mulf %31, %25 : vector<1x256xf32>
    %33 = vector.shape_cast %32 : vector<1x256xf32> to vector<1x1x256xf32>
    %cst_13 = arith.constant dense<0.000000e+00> : vector<1xf32>
    %34 = vector.multi_reduction <add>, %33, %cst_13 [1, 2] : vector<1x1x256xf32> to vector<1xf32>
    %35 = vector.shape_cast %34 : vector<1xf32> to vector<1x1x1xf32>
    %36 = vector.extract %35[0, 0, 0] : f32 from vector<1x1x1xf32>
    %37 = vector.broadcast %36 : f32 to vector<1x1x1x1xf32>
    %c0_14 = arith.constant 0 : index
    %c0_15 = arith.constant 0 : index
    %c0_16 = arith.constant 0 : index
    %c0_17 = arith.constant 0 : index
    %38 = vector.load %arg5[%c0_14, %c0_15, %c0_16, %c0_17] : memref<1x1x1x1xf32, #tpu.memory_space<vmem>>, vector<1x1x1x1xf32>
    tpu.vector_store %arg5[%c0_14, %c0_15, %c0_16, %c0_17], %37 {strides = array<i32>} : memref<1x1x1x1xf32, #tpu.memory_space<vmem>>, vector<1x1x1x1xf32>,
    return
  }
  func.func @transform_0(%arg0: i32, %arg1: i32) -> (i32, i32, i32) {
    %c0_i32 = arith.constant 0 : i32
    %c0_i32_0 = arith.constant 0 : i32
    return %arg0, %c0_i32, %arg1 : i32, i32, i32
  }
  func.func @transform_1(%arg0: i32, %arg1: i32) -> (i32, i32, i32) {
    %c0_i32 = arith.constant 0 : i32
    %c0_i32_0 = arith.constant 0 : i32
    return %arg0, %c0_i32, %arg1 : i32, i32, i32
  }
  func.func @transform_2(%arg0: i32, %arg1: i32) -> (i32, i32) {
    %c0_i32 = arith.constant 0 : i32
    %c0_i32_0 = arith.constant 0 : i32
    %c0_i32_1 = arith.constant 0 : i32
    return %c0_i32, %c0_i32_0 : i32, i32
  }
  func.func @transform_3(%arg0: i32, %arg1: i32) -> (i32, i32, i32, i32) {
    %c0_i32 = arith.constant 0 : i32
    %c0_i32_0 = arith.constant 0 : i32
    %c0_i32_1 = arith.constant 0 : i32
    return %arg0, %arg1, %c0_i32, %c0_i32_0 : i32, i32, i32, i32
  }
}

</mosaic_0001>

<llo_original>
// kernel: tpu_custom_call.1
$region0: #{tpu_custom_call.1}
  #allocation0 [shape = 'u32[]', space=smem, size = 0x4, offset = 0x4, fixed_abs, tag = 'smem constant byte address 0x4 - core index']
  #allocation1 [shape = 'u32[144,128]{1,0:T(1,128)}', space=vmem, size = 0x12000, scoped, tag = 'internal scratch']
  %s0 = inlined_call_operand.hbm [shape: f32[2,4,256], index: 0, kind: input, shape index: {}]
  %s1 = inlined_call_operand.vmem [shape: s32[2,1,256], index: 1, kind: input, shape index: {}]
  %s2 = inlined_call_operand.vmem [shape: f32[4,1], index: 2, kind: input, shape index: {}]
  %s3 = inlined_call_operand.vmem [shape: f32[2,1,1,1], index: 3, kind: output, shape index: {}]
  %s4 = sld [smem:[#allocation0]]
  $region49: #{tpu_custom_call.1} parent=0
    _
  %s6 = ssub.s32 1, %s4
  %s7 = scalar_select 0, %s6, %s4
  $region1: #{tpu_custom_call.1} parent=0
    #allocation2 [shape = 'u8[8192]{0}', space=vmem, size = 0x2000, scoped, tag = 'input window, operand 0']
    #allocation3 [shape = 's32[2]{0}', space=sflag, size = 0x8, scoped, tag = 'scoped memory for tpu_custom_call.1']
    %8 = vsyncpa [#allocation3], 0
    %s9 = scalar_lea.sflag [#allocation3], 1
    %10 = vsyncpa %s9, 0
    loop: start=0, step=1, limit=4
    $region2: #{tpu_custom_call.1} parent=1 // loop_pre_header
      _
    $region3: #{tpu_custom_call.1} parent=1 // loop_header
      %s12 = sphi 0, %s16
      %p13 = scmp.ge.s32.totalorder %s12, 4
      %s19 = sphi 0, %s31
      %s20 = sphi 0, %s27
      %s21 = sphi 0, %s19
      %s22 = sphi 0, %s20
      %s23 = sphi 0, %s21
      %s24 = sphi 0, %s22
      %s36 = sphi 0, %s38
      %s39 = sphi 0, %s36
      %s40 = sphi 0, %s39
      %s56 = sphi 0, %s40
      %s64 = sphi 0, %s66
      %s67 = sphi 0, %s64
      %s68 = sphi 0, %s67
      %s84 = sphi 0, %s68
      %s88 = sphi 0, %s88
      %s90 = sphi 0, %s88
      %s91 = sphi 0, %s90
      %s105 = sphi 0, %s91
      %s113 = sphi 0, %s115
      %s116 = sphi 0, %s113
      %s117 = sphi 0, %s116
      %s133 = sphi 0, %s117
    $region4: #{tpu_custom_call.1} parent=1 // loop_header_branch
      %15 = sbr.rel (%p13) target = $region8
    $region5: #{tpu_custom_call.1} parent=1 // loop_body
      %s17 = ssub.s32 %s12, 1
      %s18 = ssub.s32 %s12, 2
      %s25 = sadd.s32 1, %s20
      %p26 = scmp.ge.s32.totalorder %s25, 1
      %s27 = scalar_select %p26, 0, %s25
      %s28 = sadd.s32 1, %s19
      %s29 = scalar_select %p26, %s28, %s19
      %p30 = scmp.ge.s32.totalorder %s29, 2
      %s31 = scalar_select %p30, 0, %s29
      %s32 = ssub.s32 %s19, %s31
      %s33 = ssub.s32 %s20, %s27
      %s34 = sor.u32 %s32, %s33
      %p35 = scmp.eq.s32.totalorder %s34, 0
      %s37 = sadd.s32 %s36, 1
      %s38 = scalar_select %p35, %s36, %s37
      %p41 = pneg %p35
      %p42 = scmp.eq.s32.totalorder %s12, 1
      %p43 = por %p41, %p42
      %p44 = scmp.ne.s32.totalorder %s36, %s39
      %p45 = scmp.eq.s32.totalorder %s12, 0
      %p46 = por %p44, %p45
      %p47 = scmp.ne.s32.totalorder %s36, %s39
      %p48 = scmp.eq.s32.totalorder %s17, 1
      %p49 = por %p47, %p48
      %p50 = scmp.ne.s32.totalorder %s39, %s40
      %p51 = scmp.eq.s32.totalorder %s17, 0
      %p52 = por %p50, %p51
      %p53 = scmp.ne.s32.totalorder %s39, %s40
      %p54 = scmp.eq.s32.totalorder %s18, 1
      %p55 = por %p53, %p54
      %p57 = scmp.ne.s32.totalorder %s40, %s56
      %p58 = scmp.eq.s32.totalorder %s18, 0
      %p59 = por %p57, %p58
      %s60 = ssub.s32 %s19, %s31
      %s61 = ssub.s32 %s20, %s27
      %s62 = sor.u32 %s60, %s61
      %p63 = scmp.eq.s32.totalorder %s62, 0
      %s65 = sadd.s32 %s64, 1
      %s66 = scalar_select %p63, %s64, %s65
      %p69 = pneg %p63
      %p70 = scmp.eq.s32.totalorder %s12, 1
      %p71 = por %p69, %p70
      %p72 = scmp.ne.s32.totalorder %s64, %s67
      %p73 = scmp.eq.s32.totalorder %s12, 0
      %p74 = por %p72, %p73
      %p75 = scmp.ne.s32.totalorder %s64, %s67
      %p76 = scmp.eq.s32.totalorder %s17, 1
      %p77 = por %p75, %p76
      %p78 = scmp.ne.s32.totalorder %s67, %s68
      %p79 = scmp.eq.s32.totalorder %s17, 0
      %p80 = por %p78, %p79
      %p81 = scmp.ne.s32.totalorder %s67, %s68
      %p82 = scmp.eq.s32.totalorder %s18, 1
      %p83 = por %p81, %p82
      %p85 = scmp.ne.s32.totalorder %s68, %s84
      %p86 = scmp.eq.s32.totalorder %s18, 0
      %p87 = por %p85, %p86
      %s89 = sadd.s32 %s88, 1
      %p92 = scmp.eq.s32.totalorder %s12, 1
      %p93 = scmp.ne.s32.totalorder %s88, %s90
      %p94 = scmp.eq.s32.totalorder %s12, 0
      %p95 = por %p93, %p94
      %p96 = scmp.ne.s32.totalorder %s88, %s90
      %p97 = scmp.eq.s32.totalorder %s17, 1
      %p98 = por %p96, %p97
      %p99 = scmp.ne.s32.totalorder %s90, %s91
      %p100 = scmp.eq.s32.totalorder %s17, 0
      %p101 = por %p99, %p100
      %p102 = scmp.ne.s32.totalorder %s90, %s91
      %p103 = scmp.eq.s32.totalorder %s18, 1
      %p104 = por %p102, %p103
      %p106 = scmp.ne.s32.totalorder %s91, %s105
      %p107 = scmp.eq.s32.totalorder %s18, 0
      %p108 = por %p106, %p107
      %s109 = ssub.s32 %s19, %s31
      %s110 = ssub.s32 %s20, %s27
      %s111 = sor.u32 %s109, %s110
      %p112 = scmp.eq.s32.totalorder %s111, 0
      %s114 = sadd.s32 %s113, 1
      %s115 = scalar_select %p112, %s113, %s114
      %p118 = pneg %p112
      %p119 = scmp.eq.s32.totalorder %s12, 1
      %p120 = por %p118, %p119
      %p121 = scmp.ne.s32.totalorder %s113, %s116
      %p122 = scmp.eq.s32.totalorder %s12, 0
      %p123 = por %p121, %p122
      %p124 = scmp.ne.s32.totalorder %s113, %s116
      %p125 = scmp.eq.s32.totalorder %s17, 1
      %p126 = por %p124, %p125
      %p127 = scmp.ne.s32.totalorder %s116, %s117
      %p128 = scmp.eq.s32.totalorder %s17, 0
      %p129 = por %p127, %p128
      %p130 = scmp.ne.s32.totalorder %s116, %s117
      %p131 = scmp.eq.s32.totalorder %s18, 1
      %p132 = por %p130, %p131
      %p134 = scmp.ne.s32.totalorder %s117, %s133
      %p135 = scmp.eq.s32.totalorder %s18, 0
      %p136 = por %p134, %p135
      %p137 = scmp.le.s32.totalorder 1, %s12
      %p138 = scmp.lt.s32.totalorder %s12, 3
      %p139 = pnand %p137, %p138
      %p140 = pneg %p139
      // Predicated region
      $region9: #{tpu_custom_call.1} parent=5 // pred_check
        _
      $region10: #{tpu_custom_call.1} parent=5 // pred_check_branch
        %142 = sbr.rel (%p139) target = $region12
      $region11: #{tpu_custom_call.1} parent=5 // pred_region
        %s143 = ssub.s32 %s12, 1
        // Predicated region
        $region13: #{tpu_custom_call.1} parent=11 // pred_check
          %p144 = pneg %p101
        $region14: #{tpu_custom_call.1} parent=11 // pred_check_branch
          %146 = sbr.rel (%p144) target = $region16
        $region15: #{tpu_custom_call.1} parent=11 // pred_region
          _
        $region16: #{tpu_custom_call.1} parent=11 // pred_fallthru
          _
      $region12: #{tpu_custom_call.1} parent=5 // pred_fallthru
        _
      %p147 = scmp.lt.s32.totalorder %s12, 2
      // Predicated region
      $region17: #{tpu_custom_call.1} parent=5 // pred_check
        %p148 = pneg %p147
      $region18: #{tpu_custom_call.1} parent=5 // pred_check_branch
        %150 = sbr.rel (%p148) target = $region20
      $region19: #{tpu_custom_call.1} parent=5 // pred_region
        // Predicated region
        $region21: #{tpu_custom_call.1} parent=19 // pred_check
          %p151 = pneg %p46
        $region22: #{tpu_custom_call.1} parent=19 // pred_check_branch
          %153 = sbr.rel (%p151) target = $region24
        $region23: #{tpu_custom_call.1} parent=19 // pred_region
          %s154 = sand.u32 %s36, 1
          %s155 = scalar_lea.sflag [#allocation3], %s154
          %s156 = sand.u32 %s36, 1
          %s157 = smul.addr %s156, 8
          %s158 = scalar_lea.vmem [#allocation2], %s157
          %s159 = smul.u32 2, %s20
          %s161 = ssub.s32 128, 128
          %162 = vsyncadd %s155, %s161
          %s163 = smul.addr %s19, 2
          %s164 = sadd.s32 %s159, %s163
          %s165 = smul.addr %s164, 64
          %s166 = scalar_lea.hbm %s0, %s165
          %s168 = sshll.u32 %s158, 4
          %s169 = int_to_ptr.vmem [resolvable:$true] %s168
          %171 = dma.hbm_to_vmem [thread:$0]  %s166, 128, %s169, %s155
        $region24: #{tpu_custom_call.1} parent=19 // pred_fallthru
          _
        // Predicated region
        $region25: #{tpu_custom_call.1} parent=19 // pred_check
          %p172 = pneg %p74
        $region26: #{tpu_custom_call.1} parent=19 // pred_check_branch
          %174 = sbr.rel (%p172) target = $region28
        $region27: #{tpu_custom_call.1} parent=19 // pred_region
          %s175 = smul.u32 2, %s20
          %p176 = scmp.lt.s32.totalorder %s19, 1
          %s177 = scalar_select %p176, %s19, 1
          %p178 = scmp.lt.s32.totalorder %s175, 1
          %s179 = scalar_select %p178, %s175, 1
          %s180 = smul.addr %s177, 2
          %s181 = sadd.s32 %s179, %s180
          %s182 = scalar_lea.vmem %s1, %s181
          %s183 = smul.u32 2, %s20
        $region28: #{tpu_custom_call.1} parent=19 // pred_fallthru
          _
      $region20: #{tpu_custom_call.1} parent=5 // pred_fallthru
        _
      %p184 = scmp.le.s32.totalorder 1, %s12
      %p185 = scmp.lt.s32.totalorder %s12, 3
      %p186 = pnand %p184, %p185
      %p187 = pneg %p186
      // Predicated region
      $region29: #{tpu_custom_call.1} parent=5 // pred_check
        _
      $region30: #{tpu_custom_call.1} parent=5 // pred_check_branch
        %189 = sbr.rel (%p186) target = $region32
      $region31: #{tpu_custom_call.1} parent=5 // pred_region
        %s190 = ssub.s32 %s12, 1
        %s191 = sand.u32 %s39, 1
        %s192 = scalar_lea.sflag [#allocation3], %s191
        %s193 = sand.u32 %s39, 1
        %s194 = smul.addr %s193, 8
        %s195 = scalar_lea.vmem [#allocation2], %s194
        // Predicated region
        $region33: #{tpu_custom_call.1} parent=31 // pred_check
          %p196 = pneg %p52
        $region34: #{tpu_custom_call.1} parent=31 // pred_check_branch
          %198 = sbr.rel (%p196) target = $region36
        $region35: #{tpu_custom_call.1} parent=31 // pred_region
          %199 = dma.done %s192, 128
        $region36: #{tpu_custom_call.1} parent=31 // pred_fallthru
          _
        %s200 = sand.u32 %s39, 1
        %s201 = scalar_lea.sflag [#allocation3], %s200
        %s202 = sand.u32 %s39, 1
        %s203 = smul.addr %s202, 8
        %s204 = scalar_lea.vmem [#allocation2], %s203
        %p205 = pneg %p52
        %p206 = pneg %p49
        %s207 = smul.u32 2, %s22
        %p208 = scmp.lt.s32.totalorder %s21, 1
        %s209 = scalar_select %p208, %s21, 1
        %p210 = scmp.lt.s32.totalorder %s207, 1
        %s211 = scalar_select %p210, %s207, 1
        %s212 = smul.addr %s209, 2
        %s213 = sadd.s32 %s211, %s212
        %s214 = scalar_lea.vmem %s1, %s213
        %p215 = pneg %p80
        %p216 = pneg %p77
        %p217 = pneg %p101
        %p218 = pneg %p98
        %p219 = pneg %p129
        %p220 = pneg %p126
        %p221 = scmp.lt.s32.totalorder %s21, 1
        %s222 = scalar_select %p221, %s21, 1
        %p223 = scmp.lt.s32.totalorder %s22, 0
        %s224 = scalar_select %p223, %s22, 0
        %s225 = sadd.s32 %s224, %s222
        %s226 = scalar_lea.vmem %s3, %s225
        %s227 = smul.u32 2, %s22
        %s228 = smul.u32 2, %s22
        %p229 = scmp.lt.s32.totalorder %s21, 1
        %s230 = scalar_select %p229, %s21, 1
        %p231 = scmp.lt.s32.totalorder %s228, 1
        %s232 = scalar_select %p231, %s228, 1
        %s233 = smul.addr %s230, 2
        %s234 = sadd.s32 %s232, %s233
        %s235 = scalar_lea.vmem %s1, %s234
        %s236 = smul.u32 2, %s22
        %p237 = scmp.lt.s32.totalorder %s21, 1
        %s238 = scalar_select %p237, %s21, 1
        %p239 = scmp.lt.s32.totalorder %s22, 0
        %s240 = scalar_select %p239, %s22, 0
        %s241 = sadd.s32 %s240, %s238
        %s242 = scalar_lea.vmem %s3, %s241
        %v243 = vld [vmem:[%s195] sm:$0xff]
        %v244 = vld [vmem:[%s235] sm:$0x3]
        %v246 = vcombine.high %v243, %v243
        %vm248 = vcmask 1043456
        %v249 = vsel %vm248, %v243, -inf
        %v250 = vrot.slane %v249, 4
        %v251 = vmax.f32 %v249, %v250
        %v252 = vrot.slane %v251, 2
        %v253 = vmax.f32 %v251, %v252
        %v254 = vrot.slane %v253, 1
        %v255 = vmax.f32 %v253, %v254
        %v256 = vsel %vm248, %v246, -inf
        %v257 = vrot.slane %v256, 4
        %v258 = vmax.f32 %v256, %v257
        %v259 = vrot.slane %v258, 2
        %v260 = vmax.f32 %v258, %v259
        %v261 = vrot.slane %v260, 1
        %v262 = vmax.f32 %v260, %v261
        %v265 = vcombine.low %v255, %v262
        %v267 = vsub.f32 %v243, %v265
        %v268 = vmul.f32 %v267, 1.442695
        %v269 = vpow.pop %v268
        %v271 = vcombine.high %v269, %v269
        %v273 = vsel %vm248, %v269, 0.0
        %v274 = vrot.slane %v273, 4
        %v275 = vadd.f32 %v273, %v274
        %v276 = vrot.slane %v275, 2
        %v277 = vadd.f32 %v275, %v276
        %v278 = vrot.slane %v277, 1
        %v279 = vadd.f32 %v277, %v278
        %v280 = vsel %vm248, %v271, 0.0
        %v281 = vrot.slane %v280, 4
        %v282 = vadd.f32 %v280, %v281
        %v283 = vrot.slane %v282, 2
        %v284 = vadd.f32 %v282, %v283
        %v285 = vrot.slane %v284, 1
        %v286 = vadd.f32 %v284, %v285
        %v287 = vlog2.pop %v279
        %v288 = vmul.f32 %v287, 0.6931472
        %v289 = vlog2.pop %v286
        %v290 = vmul.f32 %v289, 0.6931472
        %v293 = vcombine.low %v288, %v290
        %v295 = vsub.f32 %v267, %v293
        %v296 = vlaneseq
        %v297 = vshrl.u32 %v296, 7
        %v298 = vlaneseq
        %v299 = vshrl.u32 %v298, 7
        %v300 = vsub.s32 0, %v299
        %v301 = vrot.slane %v244, %v300
        %v302 = vlaneseq
        %v303 = vshrl.u32 %v302, 7
        %v304 = vsub.s32 1, %v303
        %v305 = vrot.slane %v244, %v304
        %vm306 = vcmp.eq.s32.totalorder %v297, %v301
        %vm307 = vcmp.eq.s32.totalorder %v297, %v305
        %v309 = vcombine.high %v295, %v295
        %v311 = vsel %vm306, %v295, 0.0
        %v312 = vsel %vm307, %v309, 0.0
        %v313 = vsel %vm248, %v311, 0.0
        %v314 = vrot.slane %v313, 4
        %v315 = vadd.f32 %v313, %v314
        %v316 = vrot.slane %v315, 2
        %v317 = vadd.f32 %v315, %v316
        %v318 = vrot.slane %v317, 1
        %v319 = vadd.f32 %v317, %v318
        %v320 = vsel %vm248, %v312, 0.0
        %v321 = vrot.slane %v320, 4
        %v322 = vadd.f32 %v320, %v321
        %v323 = vrot.slane %v322, 2
        %v324 = vadd.f32 %v322, %v323
        %v325 = vrot.slane %v324, 1
        %v326 = vadd.f32 %v324, %v325
        %v327 = vld [vmem:[%s2] sm:$0xf]
        %329 = vset.pattern.permute.xlu0 0
        %330 = vperm.xlu0 %329, %v327
        %v331 = vpop.permute.xlu0 %330
        %v333 = vmul.f32 %v311, %v331
        %v334 = vmul.f32 %v312, %v331
        %v335 = vsel %vm248, %v333, 0.0
        %v336 = vrot.slane %v335, 4
        %v337 = vadd.f32 %v335, %v336
        %v338 = vrot.slane %v337, 2
        %v339 = vadd.f32 %v337, %v338
        %v340 = vrot.slane %v339, 1
        %v341 = vadd.f32 %v339, %v340
        %v342 = vsel %vm248, %v334, 0.0
        %v343 = vrot.slane %v342, 4
        %v344 = vadd.f32 %v342, %v343
        %v345 = vrot.slane %v344, 2
        %v346 = vadd.f32 %v344, %v345
        %v347 = vrot.slane %v346, 1
        %v348 = vadd.f32 %v346, %v347
        %v349 = vmul.f32 %v319, 1.442695
        %v350 = vpow.pop %v349
        %v351 = vmul.f32 %v326, 1.442695
        %v352 = vpow.pop %v351
        %v353 = vsub.f32 1.0, %v350
        %v354 = vsub.f32 1.0, %v352
        %v355 = vmul.f32 %v353, %v353
        %v356 = vmul.f32 %v354, %v354
        %v357 = vsub.f32 0.0, %v355
        %v358 = vsub.f32 0.0, %v356
        %v359 = vmul.f32 %v357, %v341
        %v360 = vmul.f32 %v358, %v348
        %vm361 = vcmask 1040384
        %v362 = vsel %vm361, %v359, 0.0
        %v363 = vsel %vm361, %v360, 0.0
        %v364 = vadd.f32 %v362, %v363
        %365 = vadd.xlane.f32.xlu0 %v364
        %v366 = vpop.xlane.xlu0 %365
        %v367 = vrot.slane %v366, 4
        %v368 = vadd.f32 %v366, %v367
        %v369 = vrot.slane %v368, 2
        %v370 = vadd.f32 %v368, %v369
        %v371 = vrot.slane %v370, 1
        %v372 = vadd.f32 %v370, %v371
        %s373 = vtos %v372
        %v374 = vstv %s373
        %vm375 = vcmask 0
        %376 = vst.msk [vmem:[%s242] sm:$0x1] %vm375, %v374
        %p377 = scmp.lt.s32.totalorder %s21, 1
        %s378 = scalar_select %p377, %s21, 1
        %p379 = scmp.lt.s32.totalorder %s22, 0
        %s380 = scalar_select %p379, %s22, 0
        %s381 = sadd.s32 %s380, %s378
        %s382 = scalar_lea.vmem %s3, %s381
        // Predicated region
        $region37: #{tpu_custom_call.1} parent=31 // pred_check
          %p383 = pneg %p126
        $region38: #{tpu_custom_call.1} parent=31 // pred_check_branch
          %385 = sbr.rel (%p383) target = $region40
        $region39: #{tpu_custom_call.1} parent=31 // pred_region
          _
        $region40: #{tpu_custom_call.1} parent=31 // pred_fallthru
          _
      $region32: #{tpu_custom_call.1} parent=5 // pred_fallthru
        _
      %p386 = scmp.le.s32.totalorder 2, %s12
      // Predicated region
      $region41: #{tpu_custom_call.1} parent=5 // pred_check
        %p387 = pneg %p386
      $region42: #{tpu_custom_call.1} parent=5 // pred_check_branch
        %389 = sbr.rel (%p387) target = $region44
      $region43: #{tpu_custom_call.1} parent=5 // pred_region
        %s390 = ssub.s32 %s12, 2
        // Predicated region
        $region45: #{tpu_custom_call.1} parent=43 // pred_check
          %p391 = pneg %p132
        $region46: #{tpu_custom_call.1} parent=43 // pred_check_branch
          %393 = sbr.rel (%p391) target = $region48
        $region47: #{tpu_custom_call.1} parent=43 // pred_region
          %p394 = scmp.lt.s32.totalorder %s23, 1
          %s395 = scalar_select %p394, %s23, 1
          %p396 = scmp.lt.s32.totalorder %s24, 0
          %s397 = scalar_select %p396, %s24, 0
          %s398 = sadd.s32 %s397, %s395
          %s399 = scalar_lea.vmem %s3, %s398
        $region48: #{tpu_custom_call.1} parent=43 // pred_fallthru
          _
      $region44: #{tpu_custom_call.1} parent=5 // pred_fallthru
        _
    $region6: #{tpu_custom_call.1} parent=1 // loop_footer
      %s16 = sadd.s32 1, %s12
    $region7: #{tpu_custom_call.1} parent=1 // loop_footer_branch
      %11 = sbr.rel target = $region3
    $region8: #{tpu_custom_call.1} parent=1 // loop_exit
      _
    %400 = vsyncpa [#allocation3], 1
    %s401 = scalar_lea.sflag [#allocation3], 1
    %402 = vsyncpa %s401, 1

</llo_original>
